<compile_context>
chip_gen: v5e
topology: v5e:2x2
jax: 0.10.0
libtpu: 0.0.40
codegen_flags: <defaults>
</compile_context>

<pallas_src>
import functools

import jax
import jax.numpy as jnp
from jax.experimental import pallas as pl
from jax.experimental.pallas import tpu as pltpu


def decoder_kernel(z_ref, w1_ref, b1_ref, w2_ref, b2_ref, w3_ref, b3_ref,
                   o_ref):
    cdt = w1_ref.dtype  # matmul operand dtype (bf16 fast path or f32 exact)

    # hidden1 = relu(z @ W1 + b1)   -- MXU matmul, f32 accumulate, f32 epilogue
    h1 = jnp.dot(z_ref[...], w1_ref[...], preferred_element_type=jnp.float32)
    h1 = jnp.maximum(h1 + b1_ref[...], 0.0)

    # hidden2 = relu(h1 @ W2 + b2)
    h2 = jnp.dot(h1.astype(cdt), w2_ref[...],
                 preferred_element_type=jnp.float32)
    h2 = jnp.maximum(h2 + b2_ref[...], 0.0)

    # reconstructed_x = relu(h2 @ W3 + b3)
    h3 = jnp.dot(h2.astype(cdt), w3_ref[...],
                 preferred_element_type=jnp.float32)
    o_ref[...] = jnp.maximum(h3 + b3_ref[...], 0.0).astype(o_ref.dtype)


def _round_up(x, m):
    return ((x + m - 1) // m) * m


@functools.partial(jax.jit, static_argnames=("batch_tile",))
def decoder_forward(z, params, batch_tile=512):
    """Fused 3-layer MLP decoder forward pass on TPU via Pallas.

    The matmul precision is taken from the weight dtype in `params`
    (bf16 weights -> bf16 MXU path with f32 accumulation; f32 weights ->
    exact f32 path).  Biases are always applied in f32.
    """
    w1, b1, w2, b2, w3, b3 = params
    B, latent_dim = z.shape
    h1_dim = w1.shape[1]
    h2_dim = w2.shape[1]
    out_dim = w3.shape[1]

    out_dtype = jnp.float32          # match the PyTorch module's f32 output
    compute_dtype = w1.dtype         # bf16 fast path or f32 exact path
    if z.dtype != compute_dtype:
        z = z.astype(compute_dtype)  # one cheap pass; halves z DMA when bf16

    # Batch tile: as large as possible, but keep >= 2 grid steps for larger B
    # so both v7x TensorCores get work ("parallel" grid axis).  tb is either a
    # multiple of 8 or equal to B, satisfying the (8, 128) block constraint.
    tb = min(batch_tile, B)
    if B >= 16 and B <= tb:
        tb = min(tb, _round_up(-(-B // 2), 8))
    grid = (pl.cdiv(B, tb),)

    op_bytes = jnp.dtype(compute_dtype).itemsize
    flops = 2 * B * (latent_dim * h1_dim + h1_dim * h2_dim + h2_dim * out_dim)
    bytes_accessed = (
        op_bytes * (B * latent_dim
                    + latent_dim * h1_dim + h1_dim * h2_dim + h2_dim * out_dim)
        + 4 * (h1_dim + h2_dim + out_dim)        # f32 biases
        + 4 * B * out_dim)                       # f32 output writeback

    # Grid-invariant (replicated) specs for weights / biases.
    def rep(shape):
        return pl.BlockSpec(shape, lambda i: (0,) * len(shape))

    out = pl.pallas_call(
        decoder_kernel,
        out_shape=jax.ShapeDtypeStruct((B, out_dim), out_dtype),
        grid=grid,
        in_specs=[
            pl.BlockSpec((tb, latent_dim), lambda i: (i, 0)),
            rep((latent_dim, h1_dim)),
            rep((1, h1_dim)),
            rep((h1_dim, h2_dim)),
            rep((1, h2_dim)),
            rep((h2_dim, out_dim)),
            rep((1, out_dim)),
        ],
        out_specs=pl.BlockSpec((tb, out_dim), lambda i: (i, 0)),
        compiler_params=pltpu.CompilerParams(
            dimension_semantics=("parallel",)),
        cost_estimate=pl.CostEstimate(
            flops=flops, transcendentals=0, bytes_accessed=bytes_accessed),
    )(z, w1, b1, w2, b2, w3, b3)

    return out


def init_decoder_params(key, latent_dim, output_dim, dtype=jnp.float32):
    """Deterministic init mimicking torch.nn.Linear default U[-1/sqrt(fan_in), ...].

    Weights are stored transposed relative to PyTorch: (in_features, out_features).
    """
    dims = [(latent_dim, 128), (128, 256), (256, output_dim)]
    params = []
    for (fan_in, fan_out) in dims:
        key, kw, kb = jax.random.split(key, 3)
        bound = 1.0 / jnp.sqrt(fan_in)
        w = jax.random.uniform(kw, (fan_in, fan_out), dtype, -bound, bound)
        b = jax.random.uniform(kb, (1, fan_out), dtype, -bound, bound)
        params += [w, b]
    return tuple(params)


def to_matmul_params(params, matmul_dtype=jnp.bfloat16):
    """Cast the weight matrices (not the biases) ONCE for the fast MXU path."""
    w1, b1, w2, b2, w3, b3 = params
    return (w1.astype(matmul_dtype), b1,
            w2.astype(matmul_dtype), b2,
            w3.astype(matmul_dtype), b3)


def decoder_reference(z, params):
    w1, b1, w2, b2, w3, b3 = params
    h1 = jax.nn.relu(z @ w1 + b1)
    h2 = jax.nn.relu(h1 @ w2 + b2)
    return jax.nn.relu(h2 @ w3 + b3)


if __name__ == "__main__":
    latent_dim = 32
    output_dim = 64
    batch = 8

    key = jax.random.PRNGKey(0)
    key_z, key_z2, key_p = jax.random.split(key, 3)

    z = jax.random.normal(key_z, (batch, latent_dim), dtype=jnp.float32)
    params_f32 = init_decoder_params(key_p, latent_dim, output_dim)
    ref = decoder_reference(z, params_f32)

    # Exact f32 path (matches PyTorch f32 semantics bit-for-bit up to assoc.).
    out_f32 = jax.block_until_ready(decoder_forward(z, params_f32))
    assert out_f32.shape == (batch, output_dim), out_f32.shape
    assert jnp.allclose(out_f32, ref, atol=1e-5, rtol=1e-5), "f32 mismatch vs reference"

    # Default fast path: bf16 MXU operands (cast once), f32 accumulate/epilogue.
    params_bf16 = to_matmul_params(params_f32)
    out_bf16 = jax.block_until_ready(decoder_forward(z, params_bf16))
    assert out_bf16.shape == (batch, output_dim), out_bf16.shape
    assert jnp.allclose(out_bf16, ref, atol=5e-2, rtol=5e-2), "bf16 mismatch vs reference"

    # Mid-size batch: exercises the >=2-step grid (megacore split) and a
    # masked final batch tile (40 rows -> tiles of 24 + 16).
    batch2 = 40
    z2 = jax.random.normal(key_z2, (batch2, latent_dim), dtype=jnp.float32)
    ref2 = decoder_reference(z2, params_f32)
    out2 = jax.block_until_ready(decoder_forward(z2, params_bf16))
    assert out2.shape == (batch2, output_dim), out2.shape
    assert jnp.allclose(out2, ref2, atol=5e-2, rtol=5e-2), "multi-tile mismatch vs reference"

    print("KERNEL_OK")
</pallas_src>

<mosaic_0001>
module attributes {stable_mosaic.version = 11 : i64} {
  func.func @decoder_kernel(%arg0: i32, %arg1: memref<8x32xf32, #tpu.memory_space<vmem>>, %arg2: memref<32x128xf32, #tpu.memory_space<vmem>>, %arg3: memref<1x128xf32, #tpu.memory_space<vmem>>, %arg4: memref<128x256xf32, #tpu.memory_space<vmem>>, %arg5: memref<1x256xf32, #tpu.memory_space<vmem>>, %arg6: memref<256x64xf32, #tpu.memory_space<vmem>>, %arg7: memref<1x64xf32, #tpu.memory_space<vmem>>, %arg8: memref<8x64xf32, #tpu.memory_space<vmem>>) attributes {dimension_semantics = [#tpu.dimension_semantics<parallel>], iteration_bounds = array<i64: 1>, scalar_prefetch = 0 : i64, scratch_operands = 0 : i64, tpu.core_type = #tpu.core_type<tc>, window_params = [{transform_indices = @transform_0, window_bounds = array<i64: 8, 32>}, {pipeline_mode = #tpu.pipeline_mode<synchronous>, transform_indices = @transform_1, window_bounds = array<i64: 32, 128>}, {pipeline_mode = #tpu.pipeline_mode<synchronous>, transform_indices = @transform_2, window_bounds = array<i64: 1, 128>}, {pipeline_mode = #tpu.pipeline_mode<synchronous>, transform_indices = @transform_3, window_bounds = array<i64: 128, 256>}, {pipeline_mode = #tpu.pipeline_mode<synchronous>, transform_indices = @transform_4, window_bounds = array<i64: 1, 256>}, {pipeline_mode = #tpu.pipeline_mode<synchronous>, transform_indices = @transform_5, window_bounds = array<i64: 256, 64>}, {pipeline_mode = #tpu.pipeline_mode<synchronous>, transform_indices = @transform_6, window_bounds = array<i64: 1, 64>}, {transform_indices = @transform_7, window_bounds = array<i64: 8, 64>}]} {
    %c0 = arith.constant 0 : index
    %c0_0 = arith.constant 0 : index
    %0 = vector.load %arg1[%c0, %c0_0] : memref<8x32xf32, #tpu.memory_space<vmem>>, vector<8x32xf32>
    %c0_1 = arith.constant 0 : index
    %c0_2 = arith.constant 0 : index
    %1 = vector.load %arg2[%c0_1, %c0_2] : memref<32x128xf32, #tpu.memory_space<vmem>>, vector<32x128xf32>
    %cst = arith.constant dense<0.000000e+00> : vector<8x128xf32>
    %2 = tpu.matmul %0, %1, %cst {dimension_numbers = #tpu.dot_dimension_numbers<[1], [0], [0], [1], [0, 0, 1, 1], [], []>} : vector<8x32xf32>, vector<32x128xf32>, vector<8x128xf32> -> vector<8x128xf32>
    %c0_3 = arith.constant 0 : index
    %c0_4 = arith.constant 0 : index
    %3 = vector.load %arg3[%c0_3, %c0_4] : memref<1x128xf32, #tpu.memory_space<vmem>>, vector<1x128xf32>
    %4 = vector.broadcast %3 : vector<1x128xf32> to vector<8x128xf32>
    %5 = arith.addf %2, %4 : vector<8x128xf32>
    %cst_5 = arith.constant 0.000000e+00 : f32
    %6 = vector.broadcast %cst_5 : f32 to vector<8x128xf32>
    %7 = arith.maximumf %5, %6 : vector<8x128xf32>
    %c0_6 = arith.constant 0 : index
    %c0_7 = arith.constant 0 : index
    %8 = vector.load %arg4[%c0_6, %c0_7] : memref<128x256xf32, #tpu.memory_space<vmem>>, vector<128x256xf32>
    %cst_8 = arith.constant dense<0.000000e+00> : vector<8x256xf32>
    %9 = tpu.matmul %7, %8, %cst_8 {dimension_numbers = #tpu.dot_dimension_numbers<[1], [0], [0], [1], [0, 0, 1, 1], [], []>} : vector<8x128xf32>, vector<128x256xf32>, vector<8x256xf32> -> vector<8x256xf32>
    %c0_9 = arith.constant 0 : index
    %c0_10 = arith.constant 0 : index
    %10 = vector.load %arg5[%c0_9, %c0_10] : memref<1x256xf32, #tpu.memory_space<vmem>>, vector<1x256xf32>
    %11 = vector.broadcast %10 : vector<1x256xf32> to vector<8x256xf32>
    %12 = arith.addf %9, %11 : vector<8x256xf32>
    %cst_11 = arith.constant 0.000000e+00 : f32
    %13 = vector.broadcast %cst_11 : f32 to vector<8x256xf32>
    %14 = arith.maximumf %12, %13 : vector<8x256xf32>
    %c0_12 = arith.constant 0 : index
    %c0_13 = arith.constant 0 : index
    %15 = vector.load %arg6[%c0_12, %c0_13] : memref<256x64xf32, #tpu.memory_space<vmem>>, vector<256x64xf32>
    %cst_14 = arith.constant dense<0.000000e+00> : vector<8x64xf32>
    %16 = tpu.matmul %14, %15, %cst_14 {dimension_numbers = #tpu.dot_dimension_numbers<[1], [0], [0], [1], [0, 0, 1, 1], [], []>} : vector<8x256xf32>, vector<256x64xf32>, vector<8x64xf32> -> vector<8x64xf32>
    %c0_15 = arith.constant 0 : index
    %c0_16 = arith.constant 0 : index
    %17 = vector.load %arg7[%c0_15, %c0_16] : memref<1x64xf32, #tpu.memory_space<vmem>>, vector<1x64xf32>
    %18 = vector.broadcast %17 : vector<1x64xf32> to vector<8x64xf32>
    %19 = arith.addf %16, %18 : vector<8x64xf32>
    %cst_17 = arith.constant 0.000000e+00 : f32
    %20 = vector.broadcast %cst_17 : f32 to vector<8x64xf32>
    %21 = arith.maximumf %19, %20 : vector<8x64xf32>
    %c0_18 = arith.constant 0 : index
    %c0_19 = arith.constant 0 : index
    %22 = vector.load %arg8[%c0_18, %c0_19] : memref<8x64xf32, #tpu.memory_space<vmem>>, vector<8x64xf32>
    tpu.vector_store %arg8[%c0_18, %c0_19], %21 {strides = array<i32>} : memref<8x64xf32, #tpu.memory_space<vmem>>, vector<8x64xf32>,
    return
  }
  func.func @transform_0(%arg0: i32) -> (i32, i32) {
    %c0_i32 = arith.constant 0 : i32
    %c0_i32_0 = arith.constant 0 : i32
    return %arg0, %c0_i32 : i32, i32
  }
  func.func @transform_1(%arg0: i32) -> (i32, i32) {
    %c0_i32 = arith.constant 0 : i32
    %c0_i32_0 = arith.constant 0 : i32
    %c0_i32_1 = arith.constant 0 : i32
    return %c0_i32, %c0_i32_0 : i32, i32
  }
  func.func @transform_2(%arg0: i32) -> (i32, i32) {
    %c0_i32 = arith.constant 0 : i32
    %c0_i32_0 = arith.constant 0 : i32
    %c0_i32_1 = arith.constant 0 : i32
    return %c0_i32, %c0_i32_0 : i32, i32
  }
  func.func @transform_3(%arg0: i32) -> (i32, i32) {
    %c0_i32 = arith.constant 0 : i32
    %c0_i32_0 = arith.constant 0 : i32
    %c0_i32_1 = arith.constant 0 : i32
    return %c0_i32, %c0_i32_0 : i32, i32
  }
  func.func @transform_4(%arg0: i32) -> (i32, i32) {
    %c0_i32 = arith.constant 0 : i32
    %c0_i32_0 = arith.constant 0 : i32
    %c0_i32_1 = arith.constant 0 : i32
    return %c0_i32, %c0_i32_0 : i32, i32
  }
  func.func @transform_5(%arg0: i32) -> (i32, i32) {
    %c0_i32 = arith.constant 0 : i32
    %c0_i32_0 = arith.constant 0 : i32
    %c0_i32_1 = arith.constant 0 : i32
    return %c0_i32, %c0_i32_0 : i32, i32
  }
  func.func @transform_6(%arg0: i32) -> (i32, i32) {
    %c0_i32 = arith.constant 0 : i32
    %c0_i32_0 = arith.constant 0 : i32
    %c0_i32_1 = arith.constant 0 : i32
    return %c0_i32, %c0_i32_0 : i32, i32
  }
  func.func @transform_7(%arg0: i32) -> (i32, i32) {
    %c0_i32 = arith.constant 0 : i32
    %c0_i32_0 = arith.constant 0 : i32
    return %arg0, %c0_i32 : i32, i32
  }
}

</mosaic_0001>

<llo_original>
// kernel: decoder_forward.1
$region0: #{decoder_forward.1}
  #allocation0 [shape = 'u32[]', space=smem, size = 0x4, offset = 0x4, fixed_abs, tag = 'smem constant byte address 0x4 - core index']
  #allocation1 [shape = 'u32[72,128]{1,0:T(1,128)}', space=vmem, size = 0x9000, scoped, tag = 'internal scratch']
  %s0 = inlined_call_operand.vmem [shape: f32[8,32], index: 0, kind: input, shape index: {}]
  %s1 = inlined_call_operand.vmem [shape: f32[32,128], index: 1, kind: input, shape index: {}]
  %s2 = inlined_call_operand.vmem [shape: f32[1,128], index: 2, kind: input, shape index: {}]
  %s3 = inlined_call_operand.vmem [shape: f32[128,256], index: 3, kind: input, shape index: {}]
  %s4 = inlined_call_operand.vmem [shape: f32[1,256], index: 4, kind: input, shape index: {}]
  %s5 = inlined_call_operand.vmem [shape: f32[256,64], index: 5, kind: input, shape index: {}]
  %s6 = inlined_call_operand.vmem [shape: f32[1,64], index: 6, kind: input, shape index: {}]
  %s7 = inlined_call_operand.hbm [shape: f32[8,64], index: 7, kind: output, shape index: {}]
  %s8 = sld [smem:[#allocation0]]
  $region38: #{decoder_forward.1} parent=0
    _
  %s10 = ssub.s32 1, %s8
  %s11 = scalar_select 0, %s10, %s8
  $region1: #{decoder_forward.1} parent=0
    #allocation2 [shape = 'u8[4096]{0}', space=vmem, size = 0x1000, scoped, tag = 'output window, operand 0, single buffered']
    #allocation3 [shape = 's32[1]{0}', space=sflag, size = 0x4, scoped, tag = 'scoped memory for decoder_forward.1']
    %12 = vsyncpa [#allocation3], 0
    // Predicated region
    $region2: #{decoder_forward.1} parent=1 // pred_check
      _
    $region3: #{decoder_forward.1} parent=1 // pred_check_branch
      %14 = sbr.rel (0) target = $region5
    $region4: #{decoder_forward.1} parent=1 // pred_region
      _
    $region5: #{decoder_forward.1} parent=1 // pred_fallthru
      _
    // Predicated region
    $region6: #{decoder_forward.1} parent=1 // pred_check
      _
    $region7: #{decoder_forward.1} parent=1 // pred_check_branch
      %16 = sbr.rel (0) target = $region9
    $region8: #{decoder_forward.1} parent=1 // pred_region
      _
    $region9: #{decoder_forward.1} parent=1 // pred_fallthru
      _
    // Predicated region
    $region10: #{decoder_forward.1} parent=1 // pred_check
      _
    $region11: #{decoder_forward.1} parent=1 // pred_check_branch
      %18 = sbr.rel (0) target = $region13
    $region12: #{decoder_forward.1} parent=1 // pred_region
      _
    $region13: #{decoder_forward.1} parent=1 // pred_fallthru
      _
    // Predicated region
    $region14: #{decoder_forward.1} parent=1 // pred_check
      _
    $region15: #{decoder_forward.1} parent=1 // pred_check_branch
      %20 = sbr.rel (0) target = $region17
    $region16: #{decoder_forward.1} parent=1 // pred_region
      _
    $region17: #{decoder_forward.1} parent=1 // pred_fallthru
      _
    // Predicated region
    $region18: #{decoder_forward.1} parent=1 // pred_check
      _
    $region19: #{decoder_forward.1} parent=1 // pred_check_branch
      %22 = sbr.rel (0) target = $region21
    $region20: #{decoder_forward.1} parent=1 // pred_region
      _
    $region21: #{decoder_forward.1} parent=1 // pred_fallthru
      _
    // Predicated region
    $region22: #{decoder_forward.1} parent=1 // pred_check
      _
    $region23: #{decoder_forward.1} parent=1 // pred_check_branch
      %24 = sbr.rel (0) target = $region25
    $region24: #{decoder_forward.1} parent=1 // pred_region
      _
    $region25: #{decoder_forward.1} parent=1 // pred_fallthru
      _
    // Predicated region
    $region26: #{decoder_forward.1} parent=1 // pred_check
      _
    $region27: #{decoder_forward.1} parent=1 // pred_check_branch
      %26 = sbr.rel (0) target = $region29
    $region28: #{decoder_forward.1} parent=1 // pred_region
      _
    $region29: #{decoder_forward.1} parent=1 // pred_fallthru
      _
    %v27 = vld [vmem:[%s0] sm:$0xff]
    %v28 = vld [vmem:[%s1] sm:$0xff]
    %v29 = vld [vmem:[%s1 + $0x8] sm:$0xff]
    %v30 = vld [vmem:[%s1 + $0x10] sm:$0xff]
    %v31 = vld [vmem:[%s1 + $0x18] sm:$0xff]
    %v32 = vld [vmem:[%s2] sm:$0x1]
    %v34 = vperm.slane %v32, 0
    %vm36 = vcmask 261120
    %v38 = vsel %vm36, %v27, 0
    %40 = vmatpush.msra.mxu0 0.0
    %41 = vmatpush.msra.mxu0 0.0
    %42 = vmatpush.msra.mxu0 0.0
    %43 = vmatpush.msra.mxu0 0.0
    %44 = vmatpush.msra.mxu0 0.0
    %45 = vmatpush.msra.mxu0 0.0
    %46 = vmatpush.msra.mxu0 0.0
    %47 = vmatpush.msra.mxu0 0.0
    %48 = vmatpush.msra.mxu0 0.0
    %49 = vmatpush.msra.mxu0 0.0
    %50 = vmatpush.msra.mxu0 0.0
    %51 = vmatpush.msra.mxu0 0.0
    %52 = vmatpush.msra.mxu0 %v31
    %53 = vmatpush.msra.mxu0 %v30
    %54 = vmatpush.msra.mxu0 %v29
    %55 = vmatpush.msra.mxu0 %v28
    %56 = vmatmul.f32.gmra.mxu0 %v38
    %v57 = vpop.f32.mrf.mxu0
    %v58 = vadd.f32 %v34, %v57
    %59 = vdwg.mxu0
    %v60 = vmax.f32 %v58, 0.0
    %v61 = vld [vmem:[%s3] sm:$0xff]
    %v62 = vld [vmem:[%s3 + $0x8] sm:$0xff]
    %v63 = vld [vmem:[%s3 + $0x10] sm:$0xff]
    %v64 = vld [vmem:[%s3 + $0x18] sm:$0xff]
    %v65 = vld [vmem:[%s3 + $0x20] sm:$0xff]
    %v66 = vld [vmem:[%s3 + $0x28] sm:$0xff]
    %v67 = vld [vmem:[%s3 + $0x30] sm:$0xff]
    %v68 = vld [vmem:[%s3 + $0x38] sm:$0xff]
    %v69 = vld [vmem:[%s3 + $0x40] sm:$0xff]
    %v70 = vld [vmem:[%s3 + $0x48] sm:$0xff]
    %v71 = vld [vmem:[%s3 + $0x50] sm:$0xff]
    %v72 = vld [vmem:[%s3 + $0x58] sm:$0xff]
    %v73 = vld [vmem:[%s3 + $0x60] sm:$0xff]
    %v74 = vld [vmem:[%s3 + $0x68] sm:$0xff]
    %v75 = vld [vmem:[%s3 + $0x70] sm:$0xff]
    %v76 = vld [vmem:[%s3 + $0x78] sm:$0xff]
    %v77 = vld [vmem:[%s3 + $0x80] sm:$0xff]
    %v78 = vld [vmem:[%s3 + $0x88] sm:$0xff]
    %v79 = vld [vmem:[%s3 + $0x90] sm:$0xff]
    %v80 = vld [vmem:[%s3 + $0x98] sm:$0xff]
    %v81 = vld [vmem:[%s3 + $0xa0] sm:$0xff]
    %v82 = vld [vmem:[%s3 + $0xa8] sm:$0xff]
    %v83 = vld [vmem:[%s3 + $0xb0] sm:$0xff]
    %v84 = vld [vmem:[%s3 + $0xb8] sm:$0xff]
    %v85 = vld [vmem:[%s3 + $0xc0] sm:$0xff]
    %v86 = vld [vmem:[%s3 + $0xc8] sm:$0xff]
    %v87 = vld [vmem:[%s3 + $0xd0] sm:$0xff]
    %v88 = vld [vmem:[%s3 + $0xd8] sm:$0xff]
    %v89 = vld [vmem:[%s3 + $0xe0] sm:$0xff]
    %v90 = vld [vmem:[%s3 + $0xe8] sm:$0xff]
    %v91 = vld [vmem:[%s3 + $0xf0] sm:$0xff]
    %v92 = vld [vmem:[%s3 + $0xf8] sm:$0xff]
    %v93 = vld [vmem:[%s4] sm:$0x3]
    %v95 = vperm.slane %v93, 0
    %v96 = vperm.slane %v93, 1
    %99 = vmatpush.msra.mxu0 %v91
    %100 = vmatpush.msra.mxu0 %v89
    %101 = vmatpush.msra.mxu0 %v87
    %102 = vmatpush.msra.mxu0 %v85
    %103 = vmatpush.msra.mxu0 %v83
    %104 = vmatpush.msra.mxu0 %v81
    %105 = vmatpush.msra.mxu0 %v79
    %106 = vmatpush.msra.mxu0 %v77
    %107 = vmatpush.msra.mxu0 %v75
    %108 = vmatpush.msra.mxu0 %v73
    %109 = vmatpush.msra.mxu0 %v71
    %110 = vmatpush.msra.mxu0 %v69
    %111 = vmatpush.msra.mxu0 %v67
    %112 = vmatpush.msra.mxu0 %v65
    %113 = vmatpush.msra.mxu0 %v63
    %114 = vmatpush.msra.mxu0 %v61
    %115 = vmatmul.f32.gmra.mxu0 %v60
    %v116 = vpop.f32.mrf.mxu0
    %v117 = vadd.f32 %v95, %v116
    %118 = vdwg.mxu0
    %119 = vmatpush.msra.mxu0 %v92
    %120 = vmatpush.msra.mxu0 %v90
    %121 = vmatpush.msra.mxu0 %v88
    %122 = vmatpush.msra.mxu0 %v86
    %123 = vmatpush.msra.mxu0 %v84
    %124 = vmatpush.msra.mxu0 %v82
    %125 = vmatpush.msra.mxu0 %v80
    %126 = vmatpush.msra.mxu0 %v78
    %127 = vmatpush.msra.mxu0 %v76
    %128 = vmatpush.msra.mxu0 %v74
    %129 = vmatpush.msra.mxu0 %v72
    %130 = vmatpush.msra.mxu0 %v70
    %131 = vmatpush.msra.mxu0 %v68
    %132 = vmatpush.msra.mxu0 %v66
    %133 = vmatpush.msra.mxu0 %v64
    %134 = vmatpush.msra.mxu0 %v62
    %135 = vmatmul.f32.gmra.mxu0 %v60
    %v136 = vpop.f32.mrf.mxu0
    %v137 = vadd.f32 %v96, %v136
    %138 = vdwg.mxu0
    %v139 = vmax.f32 %v117, 0.0
    %v140 = vmax.f32 %v137, 0.0
    %v141 = vld [vmem:[%s5] sm:$0xff]
    %v142 = vld [vmem:[%s5 + $0x8] sm:$0xff]
    %v143 = vld [vmem:[%s5 + $0x10] sm:$0xff]
    %v144 = vld [vmem:[%s5 + $0x18] sm:$0xff]
    %v145 = vld [vmem:[%s5 + $0x20] sm:$0xff]
    %v146 = vld [vmem:[%s5 + $0x28] sm:$0xff]
    %v147 = vld [vmem:[%s5 + $0x30] sm:$0xff]
    %v148 = vld [vmem:[%s5 + $0x38] sm:$0xff]
    %v149 = vld [vmem:[%s5 + $0x40] sm:$0xff]
    %v150 = vld [vmem:[%s5 + $0x48] sm:$0xff]
    %v151 = vld [vmem:[%s5 + $0x50] sm:$0xff]
    %v152 = vld [vmem:[%s5 + $0x58] sm:$0xff]
    %v153 = vld [vmem:[%s5 + $0x60] sm:$0xff]
    %v154 = vld [vmem:[%s5 + $0x68] sm:$0xff]
    %v155 = vld [vmem:[%s5 + $0x70] sm:$0xff]
    %v156 = vld [vmem:[%s5 + $0x78] sm:$0xff]
    %v157 = vld [vmem:[%s5 + $0x80] sm:$0xff]
    %v158 = vld [vmem:[%s5 + $0x88] sm:$0xff]
    %v159 = vld [vmem:[%s5 + $0x90] sm:$0xff]
    %v160 = vld [vmem:[%s5 + $0x98] sm:$0xff]
    %v161 = vld [vmem:[%s5 + $0xa0] sm:$0xff]
    %v162 = vld [vmem:[%s5 + $0xa8] sm:$0xff]
    %v163 = vld [vmem:[%s5 + $0xb0] sm:$0xff]
    %v164 = vld [vmem:[%s5 + $0xb8] sm:$0xff]
    %v165 = vld [vmem:[%s5 + $0xc0] sm:$0xff]
    %v166 = vld [vmem:[%s5 + $0xc8] sm:$0xff]
    %v167 = vld [vmem:[%s5 + $0xd0] sm:$0xff]
    %v168 = vld [vmem:[%s5 + $0xd8] sm:$0xff]
    %v169 = vld [vmem:[%s5 + $0xe0] sm:$0xff]
    %v170 = vld [vmem:[%s5 + $0xe8] sm:$0xff]
    %v171 = vld [vmem:[%s5 + $0xf0] sm:$0xff]
    %v172 = vld [vmem:[%s5 + $0xf8] sm:$0xff]
    %v173 = vld [vmem:[%s6] sm:$0x1]
    %v175 = vperm.slane %v173, 0
    %177 = vmatpush.msra.mxu0 %v156
    %178 = vmatpush.msra.mxu0 %v155
    %179 = vmatpush.msra.mxu0 %v154
    %180 = vmatpush.msra.mxu0 %v153
    %181 = vmatpush.msra.mxu0 %v152
    %182 = vmatpush.msra.mxu0 %v151
    %183 = vmatpush.msra.mxu0 %v150
    %184 = vmatpush.msra.mxu0 %v149
    %185 = vmatpush.msra.mxu0 %v148
    %186 = vmatpush.msra.mxu0 %v147
    %187 = vmatpush.msra.mxu0 %v146
    %188 = vmatpush.msra.mxu0 %v145
    %189 = vmatpush.msra.mxu0 %v144
    %190 = vmatpush.msra.mxu0 %v143
    %191 = vmatpush.msra.mxu0 %v142
    %192 = vmatpush.msra.mxu0 %v141
    %193 = vmatmul.f32.gmra.mxu0 %v139
    %v194 = vpop.f32.mrf.mxu0
    %v195 = vadd.f32 %v175, %v194
    %196 = vdwg.mxu0
    %197 = vmatpush.msra.mxu0 %v172
    %198 = vmatpush.msra.mxu0 %v171
    %199 = vmatpush.msra.mxu0 %v170
    %200 = vmatpush.msra.mxu0 %v169
    %201 = vmatpush.msra.mxu0 %v168
    %202 = vmatpush.msra.mxu0 %v167
    %203 = vmatpush.msra.mxu0 %v166
    %204 = vmatpush.msra.mxu0 %v165
    %205 = vmatpush.msra.mxu0 %v164
    %206 = vmatpush.msra.mxu0 %v163
    %207 = vmatpush.msra.mxu0 %v162
    %208 = vmatpush.msra.mxu0 %v161
    %209 = vmatpush.msra.mxu0 %v160
    %210 = vmatpush.msra.mxu0 %v159
    %211 = vmatpush.msra.mxu0 %v158
    %212 = vmatpush.msra.mxu0 %v157
    %213 = vmatmul.f32.gmra.mxu0 %v140
    %v214 = vpop.f32.mrf.mxu0
    %v215 = vadd.f32 %v195, %v214
    %216 = vdwg.mxu0
    %v217 = vmax.f32 %v215, 0.0
    %vm218 = vcmask 523264
    %219 = vst.msk [vmem:[#allocation2] sm:$0xff] %vm218, %v217
    // Predicated region
    $region30: #{decoder_forward.1} parent=1 // pred_check
      _
    $region31: #{decoder_forward.1} parent=1 // pred_check_branch
      %221 = sbr.rel (0) target = $region33
    $region32: #{decoder_forward.1} parent=1 // pred_region
      %223 = vsyncadd [#allocation3], 0
      %s225 = sshll.u32 [#allocation2], 4
      %s226 = int_to_ptr.vmem [resolvable:$true] %s225
      %s227 = sshll.u32 %s7, 4
      %s228 = int_to_ptr.hbm [resolvable:$true] %s227
      %230 = dma.vmem_to_hbm [thread:$0]  %s226, 128, %s228, [#allocation3]
    $region33: #{decoder_forward.1} parent=1 // pred_fallthru
      _
    // Predicated region
    $region34: #{decoder_forward.1} parent=1 // pred_check
      _
    $region35: #{decoder_forward.1} parent=1 // pred_check_branch
      %232 = sbr.rel (0) target = $region37
    $region36: #{decoder_forward.1} parent=1 // pred_region
      %234 = dma.done [#allocation3], 128
    $region37: #{decoder_forward.1} parent=1 // pred_fallthru
      _
    %235 = vsyncpa [#allocation3], 1

</llo_original>
